<compile_context>
chip_gen: v7x
topology: tpu7x:2x2x1
jax: 0.10.0
libtpu: 0.0.40
codegen_flags: <defaults>
</compile_context>

<pallas_src>
import functools

import jax
import jax.numpy as jnp
from jax.experimental import pallas as pl
from jax.experimental.pallas import tpu as pltpu

LANE = 128          # vreg lane width on all TPU generations
SUBLANE_BF16 = 16   # bf16 sublane packing granularity


def _round_up(x, m):
    return ((x + m - 1) // m) * m


def _dnn_kernel(n_layers, out_dim_real, x_ref, *refs):
    """refs = (w0, b0, w1, b1, ..., w_{L-1}, b_{L-1}, out_ref).

    Weights are bf16, already transposed to (in_pad, out_pad) so the kernel
    computes h @ W + b (== PyTorch x @ W.T + b). Biases are f32 (1, out_pad).
    Layer *output* dims are zero-padded to multiples of 128; the input
    contraction dim is only padded to bf16 sublane granularity.
    """
    out_ref = refs[-1]
    wb = refs[:-1]

    h = x_ref[...]                       # already bf16 (streamed from HBM)
    for i in range(n_layers):
        w = wb[2 * i][...]               # bf16 (in_pad, out_pad)
        b = wb[2 * i + 1][...]           # f32 (1, out_pad), broadcasts
        acc = jnp.dot(h, w, preferred_element_type=jnp.float32) + b
        if i < n_layers - 1:             # ReLU on fc_in + hidden layers only
            h = jnp.maximum(acc, 0.0).astype(jnp.bfloat16)
        else:
            h = acc                      # final logits stay f32

    # Masked softmax over the real output lanes (pad lanes -> exp(-inf) = 0).
    if h.shape[-1] != out_dim_real:
        lane_ids = jax.lax.broadcasted_iota(jnp.int32, h.shape, 1)
        h = jnp.where(lane_ids < out_dim_real, h, -jnp.inf)
    m = jnp.max(h, axis=-1, keepdims=True)
    e = jnp.exp(h - m)
    denom = jnp.sum(e, axis=-1, keepdims=True)
    # Exact divide (not approx reciprocal) so every row sums to 1 to f32 eps.
    out_ref[...] = (e / denom).astype(out_ref.dtype)


def prepare_dnn_params(weights, biases):
    """One-time layer-parameter preprocessing (hoisted out of the hot path).

    weights[i]: (in_i, out_i)  -- already transposed from PyTorch (out, in).
    biases[i]:  (out_i,)
    Returns (wb_args, dims) where wb_args are bf16/f32 padded arrays and dims
    carries the real/padded feature sizes needed by the forward wrapper.
    """
    d_in = weights[0].shape[0]
    out_dim = weights[-1].shape[1]
    d_in_pad = _round_up(d_in, SUBLANE_BF16)   # contraction dim: sublane pad only

    wb_args = []
    feat_pads = [d_in_pad]
    prev_pad = d_in_pad
    for w, b in zip(weights, biases):
        di, do = w.shape
        do_pad = _round_up(do, LANE)           # output/lane dim: pad to 128
        wp = jnp.pad(w.astype(jnp.bfloat16), ((0, prev_pad - di), (0, do_pad - do)))
        bp = jnp.pad(b.astype(jnp.float32), (0, do_pad - do)).reshape(1, do_pad)
        wb_args.append(wp)
        wb_args.append(bp)
        feat_pads.append(do_pad)
        prev_pad = do_pad

    dims = (d_in, d_in_pad, out_dim, prev_pad, tuple(feat_pads))
    return tuple(wb_args), dims


def dnn_forward(state, wb_args, dims, *, tile_m=512):
    """state: (B, S, input_size) float32. Returns (B, S, output_size) softmax."""
    d_in, d_in_pad, out_dim, out_pad, feat_pads = dims
    B, S, di = state.shape
    assert di == d_in
    M = B * S
    n_layers = len(wb_args) // 2

    # Row tiling: multiple of 16 (bf16 sublane pack); aim for >=2 grid steps so
    # ("parallel",) shards the M axis across the two v7x TensorCores.
    tile_m = min(tile_m, max(SUBLANE_BF16, _round_up(pl.cdiv(M, 2), SUBLANE_BF16)))
    m_pad = _round_up(M, tile_m)

    # Stream activations as bf16; cast folded into the pad (which copies anyway).
    x2d = jnp.pad(state.reshape(M, d_in).astype(jnp.bfloat16),
                  ((0, m_pad - M), (0, d_in_pad - d_in)))

    in_specs = [pl.BlockSpec((tile_m, d_in_pad), lambda i: (i, 0))]
    for a in wb_args:
        # Weights/biases: constant index_map -> DMA'd once, resident in VMEM.
        # TODO(synk): pipeline_mode=pl.Buffered(1) would halve their resident
        # VMEM; left at the default buffering for maximum compile portability.
        in_specs.append(pl.BlockSpec(a.shape, lambda i: (0, 0)))

    kernel = functools.partial(_dnn_kernel, n_layers, out_dim)

    weight_bytes = sum(int(a.size) * a.dtype.itemsize for a in wb_args)
    flops = 2 * m_pad * sum(feat_pads[i] * feat_pads[i + 1] for i in range(n_layers))
    cost = pl.CostEstimate(
        flops=int(flops),
        transcendentals=int(m_pad * out_pad),
        bytes_accessed=int(x2d.size * 2 + weight_bytes + m_pad * out_pad * 4),
    )

    # Explicit VMEM budget: resident (double-buffered) weights + double-buffered
    # bf16 x tile + f32 out tile + intermediates, ~30% headroom, capped well
    # below v7x's 64 MiB physical VMEM.
    max_feat_pad = max(feat_pads)
    vmem_bytes = int(1.3 * (2 * weight_bytes
                            + 2 * tile_m * d_in_pad * 2
                            + 2 * tile_m * out_pad * 4
                            + 3 * tile_m * max_feat_pad * 4))
    vmem_bytes = max(4 << 20, min(vmem_bytes, 48 << 20))

    out_padded = pl.pallas_call(
        kernel,
        out_shape=jax.ShapeDtypeStruct((m_pad, out_pad), jnp.float32),
        grid=(m_pad // tile_m,),
        in_specs=in_specs,
        out_specs=pl.BlockSpec((tile_m, out_pad), lambda i: (i, 0)),
        compiler_params=pltpu.CompilerParams(
            dimension_semantics=("parallel",),
            vmem_limit_bytes=vmem_bytes,
        ),
        cost_estimate=cost,
    )(x2d, *wb_args)

    return out_padded[:M, :out_dim].reshape(B, S, out_dim)


def init_params(input_size, output_size, hidden_layer_param, seed=5):
    """Deterministic synthetic init mirroring the module's layer shapes:
    fc_in: (input_size -> h0), hidden: (h_i -> h_{i+1}), fc_out: (h_last -> output_size).
    Weights stored as (in, out) == PyTorch weight.T.
    """
    dims = [input_size] + list(hidden_layer_param) + [output_size]
    key = jax.random.PRNGKey(seed)
    weights, biases = [], []
    for i in range(len(dims) - 1):
        key, kw, kb = jax.random.split(key, 3)
        bound = 1.0 / jnp.sqrt(dims[i])
        w = jax.random.uniform(kw, (dims[i], dims[i + 1]),
                               minval=-bound, maxval=bound, dtype=jnp.float32)
        b = jax.random.uniform(kb, (dims[i + 1],),
                               minval=-bound, maxval=bound, dtype=jnp.float32)
        weights.append(w)
        biases.append(b)
    return weights, biases


def _reference(state, weights, biases):
    """Pure-JAX f32 reference of the PyTorch forward."""
    x = state
    for i, (w, b) in enumerate(zip(weights, biases)):
        x = x @ w + b
        if i < len(weights) - 1:
            x = jnp.maximum(x, 0.0)
    return jax.nn.softmax(x, axis=-1)


if __name__ == "__main__":
    # Small shapes consistent with the module: state (batch, seq, input_size)
    B, S = 2, 8
    input_size = 32
    hidden_layer_param = [64, 48]
    output_size = 16

    weights, biases = init_params(input_size, output_size, hidden_layer_param, seed=5)
    wb_args, dims = prepare_dnn_params(weights, biases)

    key = jax.random.PRNGKey(0)
    state = jax.random.normal(key, (B, S, input_size), dtype=jnp.float32)

    out = dnn_forward(state, wb_args, dims)
    out = jax.block_until_ready(out)

    # sanity: shape, exact-normalized softmax rows, non-negative probabilities,
    # and agreement with the f32 reference (bf16 weights/activations -> loose tol).
    assert out.shape == (B, S, output_size)
    assert jnp.allclose(jnp.sum(out, axis=-1), 1.0, atol=1e-3)
    assert bool(jnp.all(out >= 0.0))
    ref = _reference(state, weights, biases)
    assert float(jnp.max(jnp.abs(out - ref))) < 5e-2

    print("KERNEL_OK")
</pallas_src>

<mosaic_0001>
module attributes {stable_mosaic.version = 11 : i64} {
  func.func @_dnn_kernel(%arg0: i32, %arg1: memref<16x32xbf16, #tpu.memory_space<vmem>>, %arg2: memref<32x128xbf16, #tpu.memory_space<vmem>>, %arg3: memref<1x128xf32, #tpu.memory_space<vmem>>, %arg4: memref<128x128xbf16, #tpu.memory_space<vmem>>, %arg5: memref<1x128xf32, #tpu.memory_space<vmem>>, %arg6: memref<128x128xbf16, #tpu.memory_space<vmem>>, %arg7: memref<1x128xf32, #tpu.memory_space<vmem>>, %arg8: memref<16x128xf32, #tpu.memory_space<vmem>>) attributes {dimension_semantics = [#tpu.dimension_semantics<parallel>], iteration_bounds = array<i64: 1>, scalar_prefetch = 0 : i64, scratch_operands = 0 : i64, tpu.core_type = #tpu.core_type<tc>, window_params = [{transform_indices = @transform_0, window_bounds = array<i64: 16, 32>}, {pipeline_mode = #tpu.pipeline_mode<synchronous>, transform_indices = @transform_1, window_bounds = array<i64: 32, 128>}, {pipeline_mode = #tpu.pipeline_mode<synchronous>, transform_indices = @transform_2, window_bounds = array<i64: 1, 128>}, {pipeline_mode = #tpu.pipeline_mode<synchronous>, transform_indices = @transform_3, window_bounds = array<i64: 128, 128>}, {pipeline_mode = #tpu.pipeline_mode<synchronous>, transform_indices = @transform_4, window_bounds = array<i64: 1, 128>}, {pipeline_mode = #tpu.pipeline_mode<synchronous>, transform_indices = @transform_5, window_bounds = array<i64: 128, 128>}, {pipeline_mode = #tpu.pipeline_mode<synchronous>, transform_indices = @transform_6, window_bounds = array<i64: 1, 128>}, {transform_indices = @transform_7, window_bounds = array<i64: 16, 128>}]} {
    %c0 = arith.constant 0 : index
    %c0_0 = arith.constant 0 : index
    %0 = vector.load %arg1[%c0, %c0_0] : memref<16x32xbf16, #tpu.memory_space<vmem>>, vector<16x32xbf16>
    %c0_1 = arith.constant 0 : index
    %c0_2 = arith.constant 0 : index
    %1 = vector.load %arg2[%c0_1, %c0_2] : memref<32x128xbf16, #tpu.memory_space<vmem>>, vector<32x128xbf16>
    %c0_3 = arith.constant 0 : index
    %c0_4 = arith.constant 0 : index
    %2 = vector.load %arg3[%c0_3, %c0_4] : memref<1x128xf32, #tpu.memory_space<vmem>>, vector<1x128xf32>
    %cst = arith.constant dense<0.000000e+00> : vector<16x128xf32>
    %3 = tpu.matmul %0, %1, %cst {dimension_numbers = #tpu.dot_dimension_numbers<[1], [0], [0], [1], [0, 0, 1, 1], [], []>} : vector<16x32xbf16>, vector<32x128xbf16>, vector<16x128xf32> -> vector<16x128xf32>
    %4 = vector.broadcast %2 : vector<1x128xf32> to vector<16x128xf32>
    %5 = arith.addf %3, %4 : vector<16x128xf32>
    %cst_5 = arith.constant 0.000000e+00 : f32
    %6 = vector.broadcast %cst_5 : f32 to vector<16x128xf32>
    %7 = arith.maximumf %5, %6 : vector<16x128xf32>
    %8 = arith.truncf %7 : vector<16x128xf32> to vector<16x128xbf16>
    %c0_6 = arith.constant 0 : index
    %c0_7 = arith.constant 0 : index
    %9 = vector.load %arg4[%c0_6, %c0_7] : memref<128x128xbf16, #tpu.memory_space<vmem>>, vector<128x128xbf16>
    %c0_8 = arith.constant 0 : index
    %c0_9 = arith.constant 0 : index
    %10 = vector.load %arg5[%c0_8, %c0_9] : memref<1x128xf32, #tpu.memory_space<vmem>>, vector<1x128xf32>
    %cst_10 = arith.constant dense<0.000000e+00> : vector<16x128xf32>
    %11 = tpu.matmul %8, %9, %cst_10 {dimension_numbers = #tpu.dot_dimension_numbers<[1], [0], [0], [1], [0, 0, 1, 1], [], []>} : vector<16x128xbf16>, vector<128x128xbf16>, vector<16x128xf32> -> vector<16x128xf32>
    %12 = vector.broadcast %10 : vector<1x128xf32> to vector<16x128xf32>
    %13 = arith.addf %11, %12 : vector<16x128xf32>
    %cst_11 = arith.constant 0.000000e+00 : f32
    %14 = vector.broadcast %cst_11 : f32 to vector<16x128xf32>
    %15 = arith.maximumf %13, %14 : vector<16x128xf32>
    %16 = arith.truncf %15 : vector<16x128xf32> to vector<16x128xbf16>
    %c0_12 = arith.constant 0 : index
    %c0_13 = arith.constant 0 : index
    %17 = vector.load %arg6[%c0_12, %c0_13] : memref<128x128xbf16, #tpu.memory_space<vmem>>, vector<128x128xbf16>
    %c0_14 = arith.constant 0 : index
    %c0_15 = arith.constant 0 : index
    %18 = vector.load %arg7[%c0_14, %c0_15] : memref<1x128xf32, #tpu.memory_space<vmem>>, vector<1x128xf32>
    %cst_16 = arith.constant dense<0.000000e+00> : vector<16x128xf32>
    %19 = tpu.matmul %16, %17, %cst_16 {dimension_numbers = #tpu.dot_dimension_numbers<[1], [0], [0], [1], [0, 0, 1, 1], [], []>} : vector<16x128xbf16>, vector<128x128xbf16>, vector<16x128xf32> -> vector<16x128xf32>
    %20 = vector.broadcast %18 : vector<1x128xf32> to vector<16x128xf32>
    %21 = arith.addf %19, %20 : vector<16x128xf32>
    %22 = tpu.iota {dimensions = array<i32: 1>} : vector<16x128xi32>
    %c16_i32 = arith.constant 16 : i32
    %23 = vector.broadcast %c16_i32 : i32 to vector<16x128xi32>
    %24 = arith.cmpi slt, %22, %23 : vector<16x128xi32>
    %cst_17 = arith.constant 0xFF800000 : f32
    %25 = vector.broadcast %cst_17 : f32 to vector<16x128xf32>
    %26 = arith.select %24, %21, %25 : vector<16x128xi1>, vector<16x128xf32>
    %cst_18 = arith.constant dense<0xFF800000> : vector<16xf32>
    %27 = vector.multi_reduction <maximumf>, %26, %cst_18 [1] : vector<16x128xf32> to vector<16xf32>
    %28 = vector.shape_cast %27 : vector<16xf32> to vector<16x1xf32>
    %29 = vector.broadcast %28 : vector<16x1xf32> to vector<16x128xf32>
    %30 = arith.subf %26, %29 : vector<16x128xf32>
    %31 = math.exp %30 : vector<16x128xf32>
    %cst_19 = arith.constant dense<0.000000e+00> : vector<16xf32>
    %32 = vector.multi_reduction <add>, %31, %cst_19 [1] : vector<16x128xf32> to vector<16xf32>
    %33 = vector.shape_cast %32 : vector<16xf32> to vector<16x1xf32>
    %34 = vector.broadcast %33 : vector<16x1xf32> to vector<16x128xf32>
    %35 = arith.divf %31, %34 : vector<16x128xf32>
    %c0_20 = arith.constant 0 : index
    %c0_21 = arith.constant 0 : index
    %36 = vector.load %arg8[%c0_20, %c0_21] : memref<16x128xf32, #tpu.memory_space<vmem>>, vector<16x128xf32>
    tpu.vector_store %arg8[%c0_20, %c0_21], %35 {strides = array<i32>} : memref<16x128xf32, #tpu.memory_space<vmem>>, vector<16x128xf32>,
    return
  }
  func.func @transform_0(%arg0: i32) -> (i32, i32) {
    %c0_i32 = arith.constant 0 : i32
    %c0_i32_0 = arith.constant 0 : i32
    return %arg0, %c0_i32 : i32, i32
  }
  func.func @transform_1(%arg0: i32) -> (i32, i32) {
    %c0_i32 = arith.constant 0 : i32
    %c0_i32_0 = arith.constant 0 : i32
    %c0_i32_1 = arith.constant 0 : i32
    return %c0_i32, %c0_i32_0 : i32, i32
  }
  func.func @transform_2(%arg0: i32) -> (i32, i32) {
    %c0_i32 = arith.constant 0 : i32
    %c0_i32_0 = arith.constant 0 : i32
    %c0_i32_1 = arith.constant 0 : i32
    return %c0_i32, %c0_i32_0 : i32, i32
  }
  func.func @transform_3(%arg0: i32) -> (i32, i32) {
    %c0_i32 = arith.constant 0 : i32
    %c0_i32_0 = arith.constant 0 : i32
    %c0_i32_1 = arith.constant 0 : i32
    return %c0_i32, %c0_i32_0 : i32, i32
  }
  func.func @transform_4(%arg0: i32) -> (i32, i32) {
    %c0_i32 = arith.constant 0 : i32
    %c0_i32_0 = arith.constant 0 : i32
    %c0_i32_1 = arith.constant 0 : i32
    return %c0_i32, %c0_i32_0 : i32, i32
  }
  func.func @transform_5(%arg0: i32) -> (i32, i32) {
    %c0_i32 = arith.constant 0 : i32
    %c0_i32_0 = arith.constant 0 : i32
    %c0_i32_1 = arith.constant 0 : i32
    return %c0_i32, %c0_i32_0 : i32, i32
  }
  func.func @transform_6(%arg0: i32) -> (i32, i32) {
    %c0_i32 = arith.constant 0 : i32
    %c0_i32_0 = arith.constant 0 : i32
    %c0_i32_1 = arith.constant 0 : i32
    return %c0_i32, %c0_i32_0 : i32, i32
  }
  func.func @transform_7(%arg0: i32) -> (i32, i32) {
    %c0_i32 = arith.constant 0 : i32
    %c0_i32_0 = arith.constant 0 : i32
    return %arg0, %c0_i32 : i32, i32
  }
}

</mosaic_0001>

<llo_original>
// kernel: tpu_custom_call.1
$region0: #{tpu_custom_call.1}
  #allocation0 [shape = 'u32[]', space=smem, size = 0x4, offset = 0x4, fixed_abs, tag = 'smem constant byte address 0x4 - core index']
  #allocation1 [shape = 'u32[144,128]{1,0:T(1,128)}', space=vmem, size = 0x12000, scoped, tag = 'internal scratch']
  %s0 = inlined_call_operand.hbm [shape: bf16[16,32], index: 0, kind: input, shape index: {}]
  %s1 = inlined_call_operand.hbm [shape: bf16[32,128], index: 1, kind: input, shape index: {}]
  %s2 = inlined_call_operand.vmem [shape: f32[1,128], index: 2, kind: input, shape index: {}]
  %s3 = inlined_call_operand.hbm [shape: bf16[128,128], index: 3, kind: input, shape index: {}]
  %s4 = inlined_call_operand.vmem [shape: f32[1,128], index: 4, kind: input, shape index: {}]
  %s5 = inlined_call_operand.hbm [shape: bf16[128,128], index: 5, kind: input, shape index: {}]
  %s6 = inlined_call_operand.vmem [shape: f32[1,128], index: 6, kind: input, shape index: {}]
  %s7 = inlined_call_operand.hbm [shape: f32[16,128], index: 7, kind: output, shape index: {}]
  %s8 = sld [smem:[#allocation0]]
  $region54: #{tpu_custom_call.1} parent=0
    _
  %s10 = ssub.s32 1, %s8
  %s11 = scalar_select 0, %s10, %s8
  $region1: #{tpu_custom_call.1} parent=0
    #allocation2 [shape = 'u8[4096]{0}', space=vmem, size = 0x1000, scoped, tag = 'input window, operand 0, single buffered']
    #allocation3 [shape = 's32[1]{0}', space=sflag, size = 0x4, scoped, tag = 'scoped memory for tpu_custom_call.1']
    #allocation4 [shape = 's32[1]{0}', space=sflag, size = 0x4, scoped, tag = 'scoped memory for tpu_custom_call.1']
    #allocation5 [shape = 'u8[8192]{0}', space=vmem, size = 0x2000, scoped, tag = 'input window, operand 1, single buffered']
    #allocation6 [shape = 's32[1]{0}', space=sflag, size = 0x4, scoped, tag = 'scoped memory for tpu_custom_call.1']
    #allocation7 [shape = 'u8[32768]{0}', space=vmem, size = 0x8000, scoped, tag = 'input window, operand 3, single buffered']
    #allocation8 [shape = 'u8[32768]{0}', space=vmem, size = 0x8000, scoped, tag = 'input window, operand 5, single buffered']
    #allocation9 [shape = 's32[1]{0}', space=sflag, size = 0x4, scoped, tag = 'scoped memory for tpu_custom_call.1']
    #allocation10 [shape = 'u8[8192]{0}', space=vmem, size = 0x2000, scoped, tag = 'output window, operand 0, single buffered']
    %12 = vsyncpa [#allocation3], 0
    %13 = vsyncpa [#allocation6], 0
    %14 = vsyncpa [#allocation9], 0
    %15 = vsyncpa [#allocation4], 0
    // Predicated region
    $region2: #{tpu_custom_call.1} parent=1 // pred_check
      _
    $region3: #{tpu_custom_call.1} parent=1 // pred_check_branch
      %17 = sbr.rel (0) target = $region5
    $region4: #{tpu_custom_call.1} parent=1 // pred_region
      %s19 = ssub.s32 128, 128
      %20 = vsyncadd [#allocation3], %s19
      %s21 = sshll.u32 [#allocation2], 4
      %s22 = int_to_ptr.vmem [resolvable:$true] %s21
      %27 = dma.hbm_to_vmem [thread:$0]  %s0, 128, %s22, [#allocation3], 64, 64, 4
    $region5: #{tpu_custom_call.1} parent=1 // pred_fallthru
      _
    // Predicated region
    $region6: #{tpu_custom_call.1} parent=1 // pred_check
      _
    $region7: #{tpu_custom_call.1} parent=1 // pred_check_branch
      %29 = sbr.rel (0) target = $region9
    $region8: #{tpu_custom_call.1} parent=1 // pred_region
      %s31 = ssub.s32 256, 256
      %32 = vsyncadd [#allocation6], %s31
      %s33 = sshll.u32 [#allocation5], 4
      %s34 = int_to_ptr.vmem [resolvable:$true] %s33
      %39 = dma.hbm_to_vmem [thread:$0]  %s1, 256, %s34, [#allocation6], 64, 64, 4
    $region9: #{tpu_custom_call.1} parent=1 // pred_fallthru
      _
    // Predicated region
    $region10: #{tpu_custom_call.1} parent=1 // pred_check
      _
    $region11: #{tpu_custom_call.1} parent=1 // pred_check_branch
      %41 = sbr.rel (0) target = $region13
    $region12: #{tpu_custom_call.1} parent=1 // pred_region
      _
    $region13: #{tpu_custom_call.1} parent=1 // pred_fallthru
      _
    // Predicated region
    $region14: #{tpu_custom_call.1} parent=1 // pred_check
      _
    $region15: #{tpu_custom_call.1} parent=1 // pred_check_branch
      %43 = sbr.rel (0) target = $region17
    $region16: #{tpu_custom_call.1} parent=1 // pred_region
      %s45 = ssub.s32 1024, 1024
      %46 = vsyncadd [#allocation6], %s45
      %s47 = sshll.u32 [#allocation7], 4
      %s48 = int_to_ptr.vmem [resolvable:$true] %s47
      %53 = dma.hbm_to_vmem [thread:$0]  %s3, 1024, %s48, [#allocation6], 64, 64, 4
    $region17: #{tpu_custom_call.1} parent=1 // pred_fallthru
      _
    // Predicated region
    $region18: #{tpu_custom_call.1} parent=1 // pred_check
      _
    $region19: #{tpu_custom_call.1} parent=1 // pred_check_branch
      %55 = sbr.rel (0) target = $region21
    $region20: #{tpu_custom_call.1} parent=1 // pred_region
      _
    $region21: #{tpu_custom_call.1} parent=1 // pred_fallthru
      _
    // Predicated region
    $region22: #{tpu_custom_call.1} parent=1 // pred_check
      _
    $region23: #{tpu_custom_call.1} parent=1 // pred_check_branch
      %57 = sbr.rel (0) target = $region25
    $region24: #{tpu_custom_call.1} parent=1 // pred_region
      %s59 = ssub.s32 1024, 1024
      %60 = vsyncadd [#allocation9], %s59
      %s61 = sshll.u32 [#allocation8], 4
      %s62 = int_to_ptr.vmem [resolvable:$true] %s61
      %67 = dma.hbm_to_vmem [thread:$0]  %s5, 1024, %s62, [#allocation9], 64, 64, 4
    $region25: #{tpu_custom_call.1} parent=1 // pred_fallthru
      _
    // Predicated region
    $region26: #{tpu_custom_call.1} parent=1 // pred_check
      _
    $region27: #{tpu_custom_call.1} parent=1 // pred_check_branch
      %69 = sbr.rel (0) target = $region29
    $region28: #{tpu_custom_call.1} parent=1 // pred_region
      _
    $region29: #{tpu_custom_call.1} parent=1 // pred_fallthru
      _
    // Predicated region
    $region30: #{tpu_custom_call.1} parent=1 // pred_check
      _
    $region31: #{tpu_custom_call.1} parent=1 // pred_check_branch
      %71 = sbr.rel (0) target = $region33
    $region32: #{tpu_custom_call.1} parent=1 // pred_region
      %72 = dma.done [#allocation3], 128
    $region33: #{tpu_custom_call.1} parent=1 // pred_fallthru
      _
    // Predicated region
    $region34: #{tpu_custom_call.1} parent=1 // pred_check
      _
    $region35: #{tpu_custom_call.1} parent=1 // pred_check_branch
      %74 = sbr.rel (0) target = $region37
    $region36: #{tpu_custom_call.1} parent=1 // pred_region
      %75 = dma.done [#allocation6], 256
    $region37: #{tpu_custom_call.1} parent=1 // pred_fallthru
      _
    // Predicated region
    $region38: #{tpu_custom_call.1} parent=1 // pred_check
      _
    $region39: #{tpu_custom_call.1} parent=1 // pred_check_branch
      %77 = sbr.rel (0) target = $region41
    $region40: #{tpu_custom_call.1} parent=1 // pred_region
      %78 = dma.done [#allocation6], 1024
    $region41: #{tpu_custom_call.1} parent=1 // pred_fallthru
      _
    // Predicated region
    $region42: #{tpu_custom_call.1} parent=1 // pred_check
      _
    $region43: #{tpu_custom_call.1} parent=1 // pred_check_branch
      %80 = sbr.rel (0) target = $region45
    $region44: #{tpu_custom_call.1} parent=1 // pred_region
      %81 = dma.done [#allocation9], 1024
    $region45: #{tpu_custom_call.1} parent=1 // pred_fallthru
      _
    %v83 = vld [vmem:[#allocation2] sm:$0xf]
    %v84 = vld [vmem:[#allocation2 + $0x4] sm:$0xf]
    %v85 = vld [vmem:[#allocation5] sm:$0xf]
    %v86 = vld [vmem:[#allocation5 + $0x4] sm:$0xf]
    %v87 = vld [vmem:[#allocation5 + $0x8] sm:$0xf]
    %v88 = vld [vmem:[#allocation5 + $0xc] sm:$0xf]
    %v89 = vld [vmem:[%s2] sm:$0x1]
    %v91 = vlaneseq
    %v92 = vshrl.u32 %v91, 7
    %v93 = vsub.s32 0, %v92
    %v94 = vrot.slane %v89, %v93
    %v98 = vunpack.c.l.b16 %v83
    %v99 = vunpack.c.l.b16 %v84
    %v100 = vpack.c.b16 %v99, %v98
    %v105 = vunpack.c.l.b16 %v85
    %v106 = vunpack.c.l.b16 %v86
    %v107 = vunpack.c.l.b16 %v87
    %v108 = vunpack.c.l.b16 %v88
    %v109 = vpack.c.b16 %v106, %v105
    %v110 = vpack.c.b16 %v108, %v107
    %vm113 = vcmask 261120
    %v115 = vsel %vm113, %v100, 0
    %117 = vmatprep.subr.bf16.mxu0 0
    %118 = vmatpush1.bf16.msra.mxu0 %v109
    %119 = vmatprep.subr.bf16.mxu0 0
    %120 = vmatpush1.bf16.msra.mxu0 %v110
    %121 = vmatprep.subr.bf16.mxu0 0
    %122 = vmatpush1.bf16.msra.mxu0 0
    %123 = vmatprep.subr.bf16.mxu0 0
    %124 = vmatpush1.bf16.msra.mxu0 0
    %125 = vmatprep.subr.bf16.mxu0 0
    %126 = vmatpush1.bf16.msra.mxu0 0
    %127 = vmatprep.subr.bf16.mxu0 0
    %128 = vmatpush1.bf16.msra.mxu0 0
    %129 = vmatprep.subr.bf16.mxu0 0
    %130 = vmatpush1.bf16.msra.mxu0 0
    %131 = vmatprep.subr.bf16.mxu0 0
    %132 = vmatpush1.bf16.msra.mxu0 0
    %133 = vmatprep.subr.bf16.mxu0 0
    %134 = vmatpush1.bf16.msra.mxu0 0
    %135 = vmatprep.subr.bf16.mxu0 0
    %136 = vmatpush1.bf16.msra.mxu0 0
    %137 = vmatprep.subr.bf16.mxu0 0
    %138 = vmatpush1.bf16.msra.mxu0 0
    %139 = vmatprep.subr.bf16.mxu0 0
    %140 = vmatpush1.bf16.msra.mxu0 0
    %141 = vmatprep.subr.bf16.mxu0 0
    %142 = vmatpush1.bf16.msra.mxu0 0
    %143 = vmatprep.subr.bf16.mxu0 0
    %144 = vmatpush1.bf16.msra.mxu0 0
    %145 = vmatprep.subr.bf16.mxu0 0
    %146 = vmatpush1.bf16.msra.mxu0 0
    %147 = vmatprep.subr.bf16.mxu0 0
    %148 = vmatpush1.bf16.msra.mxu0 0
    %149 = vmatprep.mubr.bf16.mxu0 0
    %150 = vmatmul.mubr.bf16.gmra.mrb[0].mxu0 %v115
    %v151 = vpop.f32.mrb[0].mxu0
    %v152 = vadd.f32 %v94, %v151
    %v153 = vpop.f32.mrb[0].mxu0
    %v154 = vpop.f32.mrb[0].mxu0
    %v155 = vadd.f32 %v94, %v154
    %v156 = vpop.f32.mrb[0].mxu0
    %157 = vdwg.mxu0
    %v158 = vmax.f32 %v152, 0.0
    %v159 = vmax.f32 %v155, 0.0
    %v160 = vpack.c.bf16 %v159, %v158
    %v161 = vld [vmem:[#allocation7] sm:$0xf]
    %v162 = vld [vmem:[#allocation7 + $0x4] sm:$0xf]
    %v163 = vld [vmem:[#allocation7 + $0x8] sm:$0xf]
    %v164 = vld [vmem:[#allocation7 + $0xc] sm:$0xf]
    %v165 = vld [vmem:[#allocation7 + $0x10] sm:$0xf]
    %v166 = vld [vmem:[#allocation7 + $0x14] sm:$0xf]
    %v167 = vld [vmem:[#allocation7 + $0x18] sm:$0xf]
    %v168 = vld [vmem:[#allocation7 + $0x1c] sm:$0xf]
    %v169 = vld [vmem:[#allocation7 + $0x20] sm:$0xf]
    %v170 = vld [vmem:[#allocation7 + $0x24] sm:$0xf]
    %v171 = vld [vmem:[#allocation7 + $0x28] sm:$0xf]
    %v172 = vld [vmem:[#allocation7 + $0x2c] sm:$0xf]
    %v173 = vld [vmem:[#allocation7 + $0x30] sm:$0xf]
    %v174 = vld [vmem:[#allocation7 + $0x34] sm:$0xf]
    %v175 = vld [vmem:[#allocation7 + $0x38] sm:$0xf]
    %v176 = vld [vmem:[#allocation7 + $0x3c] sm:$0xf]
    %v177 = vld [vmem:[%s4] sm:$0x1]
    %v179 = vlaneseq
    %v180 = vshrl.u32 %v179, 7
    %v181 = vsub.s32 0, %v180
    %v182 = vrot.slane %v177, %v181
    %v200 = vunpack.c.l.b16 %v161
    %v201 = vunpack.c.l.b16 %v162
    %v202 = vunpack.c.l.b16 %v163
    %v203 = vunpack.c.l.b16 %v164
    %v204 = vunpack.c.l.b16 %v165
    %v205 = vunpack.c.l.b16 %v166
    %v206 = vunpack.c.l.b16 %v167
    %v207 = vunpack.c.l.b16 %v168
    %v208 = vunpack.c.l.b16 %v169
    %v209 = vunpack.c.l.b16 %v170
    %v210 = vunpack.c.l.b16 %v171
    %v211 = vunpack.c.l.b16 %v172
    %v212 = vunpack.c.l.b16 %v173
    %v213 = vunpack.c.l.b16 %v174
    %v214 = vunpack.c.l.b16 %v175
    %v215 = vunpack.c.l.b16 %v176
    %v216 = vpack.c.b16 %v201, %v200
    %v217 = vpack.c.b16 %v203, %v202
    %v218 = vpack.c.b16 %v205, %v204
    %v219 = vpack.c.b16 %v207, %v206
    %v220 = vpack.c.b16 %v209, %v208
    %v221 = vpack.c.b16 %v211, %v210
    %v222 = vpack.c.b16 %v213, %v212
    %v223 = vpack.c.b16 %v215, %v214
    %232 = vmatprep.subr.bf16.mxu0 0
    %233 = vmatpush1.bf16.msra.mxu0 %v216
    %234 = vmatprep.subr.bf16.mxu0 0
    %235 = vmatpush1.bf16.msra.mxu0 %v217
    %236 = vmatprep.subr.bf16.mxu0 0
    %237 = vmatpush1.bf16.msra.mxu0 %v218
    %238 = vmatprep.subr.bf16.mxu0 0
    %239 = vmatpush1.bf16.msra.mxu0 %v219
    %240 = vmatprep.subr.bf16.mxu0 0
    %241 = vmatpush1.bf16.msra.mxu0 %v220
    %242 = vmatprep.subr.bf16.mxu0 0
    %243 = vmatpush1.bf16.msra.mxu0 %v221
    %244 = vmatprep.subr.bf16.mxu0 0
    %245 = vmatpush1.bf16.msra.mxu0 %v222
    %246 = vmatprep.subr.bf16.mxu0 0
    %247 = vmatpush1.bf16.msra.mxu0 %v223
    %248 = vmatprep.subr.bf16.mxu0 0
    %249 = vmatpush1.bf16.msra.mxu0 0
    %250 = vmatprep.subr.bf16.mxu0 0
    %251 = vmatpush1.bf16.msra.mxu0 0
    %252 = vmatprep.subr.bf16.mxu0 0
    %253 = vmatpush1.bf16.msra.mxu0 0
    %254 = vmatprep.subr.bf16.mxu0 0
    %255 = vmatpush1.bf16.msra.mxu0 0
    %256 = vmatprep.subr.bf16.mxu0 0
    %257 = vmatpush1.bf16.msra.mxu0 0
    %258 = vmatprep.subr.bf16.mxu0 0
    %259 = vmatpush1.bf16.msra.mxu0 0
    %260 = vmatprep.subr.bf16.mxu0 0
    %261 = vmatpush1.bf16.msra.mxu0 0
    %262 = vmatprep.subr.bf16.mxu0 0
    %263 = vmatpush1.bf16.msra.mxu0 0
    %264 = vmatprep.mubr.bf16.mxu0 0
    %265 = vmatmul.mubr.bf16.gmra.mrb[0].mxu0 %v160
    %v266 = vpop.f32.mrb[0].mxu0
    %v267 = vadd.f32 %v182, %v266
    %v268 = vpop.f32.mrb[0].mxu0
    %v269 = vpop.f32.mrb[0].mxu0
    %v270 = vadd.f32 %v182, %v269
    %v271 = vpop.f32.mrb[0].mxu0
    %272 = vdwg.mxu0
    %v273 = vmax.f32 %v267, 0.0
    %v274 = vmax.f32 %v270, 0.0
    %v275 = vpack.c.bf16 %v274, %v273
    %v276 = vld [vmem:[#allocation8] sm:$0xf]
    %v277 = vld [vmem:[#allocation8 + $0x4] sm:$0xf]
    %v278 = vld [vmem:[#allocation8 + $0x8] sm:$0xf]
    %v279 = vld [vmem:[#allocation8 + $0xc] sm:$0xf]
    %v280 = vld [vmem:[#allocation8 + $0x10] sm:$0xf]
    %v281 = vld [vmem:[#allocation8 + $0x14] sm:$0xf]
    %v282 = vld [vmem:[#allocation8 + $0x18] sm:$0xf]
    %v283 = vld [vmem:[#allocation8 + $0x1c] sm:$0xf]
    %v284 = vld [vmem:[#allocation8 + $0x20] sm:$0xf]
    %v285 = vld [vmem:[#allocation8 + $0x24] sm:$0xf]
    %v286 = vld [vmem:[#allocation8 + $0x28] sm:$0xf]
    %v287 = vld [vmem:[#allocation8 + $0x2c] sm:$0xf]
    %v288 = vld [vmem:[#allocation8 + $0x30] sm:$0xf]
    %v289 = vld [vmem:[#allocation8 + $0x34] sm:$0xf]
    %v290 = vld [vmem:[#allocation8 + $0x38] sm:$0xf]
    %v291 = vld [vmem:[#allocation8 + $0x3c] sm:$0xf]
    %v292 = vld [vmem:[%s6] sm:$0x1]
    %v294 = vlaneseq
    %v295 = vshrl.u32 %v294, 7
    %v296 = vsub.s32 0, %v295
    %v297 = vrot.slane %v292, %v296
    %v315 = vunpack.c.l.b16 %v276
    %v316 = vunpack.c.l.b16 %v277
    %v317 = vunpack.c.l.b16 %v278
    %v318 = vunpack.c.l.b16 %v279
    %v319 = vunpack.c.l.b16 %v280
    %v320 = vunpack.c.l.b16 %v281
    %v321 = vunpack.c.l.b16 %v282
    %v322 = vunpack.c.l.b16 %v283
    %v323 = vunpack.c.l.b16 %v284
    %v324 = vunpack.c.l.b16 %v285
    %v325 = vunpack.c.l.b16 %v286
    %v326 = vunpack.c.l.b16 %v287
    %v327 = vunpack.c.l.b16 %v288
    %v328 = vunpack.c.l.b16 %v289
    %v329 = vunpack.c.l.b16 %v290
    %v330 = vunpack.c.l.b16 %v291
    %v331 = vpack.c.b16 %v316, %v315
    %v332 = vpack.c.b16 %v318, %v317
    %v333 = vpack.c.b16 %v320, %v319
    %v334 = vpack.c.b16 %v322, %v321
    %v335 = vpack.c.b16 %v324, %v323
    %v336 = vpack.c.b16 %v326, %v325
    %v337 = vpack.c.b16 %v328, %v327
    %v338 = vpack.c.b16 %v330, %v329
    %347 = vmatprep.subr.bf16.mxu0 0
    %348 = vmatpush1.bf16.msra.mxu0 %v331
    %349 = vmatprep.subr.bf16.mxu0 0
    %350 = vmatpush1.bf16.msra.mxu0 %v332
    %351 = vmatprep.subr.bf16.mxu0 0
    %352 = vmatpush1.bf16.msra.mxu0 %v333
    %353 = vmatprep.subr.bf16.mxu0 0
    %354 = vmatpush1.bf16.msra.mxu0 %v334
    %355 = vmatprep.subr.bf16.mxu0 0
    %356 = vmatpush1.bf16.msra.mxu0 %v335
    %357 = vmatprep.subr.bf16.mxu0 0
    %358 = vmatpush1.bf16.msra.mxu0 %v336
    %359 = vmatprep.subr.bf16.mxu0 0
    %360 = vmatpush1.bf16.msra.mxu0 %v337
    %361 = vmatprep.subr.bf16.mxu0 0
    %362 = vmatpush1.bf16.msra.mxu0 %v338
    %363 = vmatprep.subr.bf16.mxu0 0
    %364 = vmatpush1.bf16.msra.mxu0 0
    %365 = vmatprep.subr.bf16.mxu0 0
    %366 = vmatpush1.bf16.msra.mxu0 0
    %367 = vmatprep.subr.bf16.mxu0 0
    %368 = vmatpush1.bf16.msra.mxu0 0
    %369 = vmatprep.subr.bf16.mxu0 0
    %370 = vmatpush1.bf16.msra.mxu0 0
    %371 = vmatprep.subr.bf16.mxu0 0
    %372 = vmatpush1.bf16.msra.mxu0 0
    %373 = vmatprep.subr.bf16.mxu0 0
    %374 = vmatpush1.bf16.msra.mxu0 0
    %375 = vmatprep.subr.bf16.mxu0 0
    %376 = vmatpush1.bf16.msra.mxu0 0
    %377 = vmatprep.subr.bf16.mxu0 0
    %378 = vmatpush1.bf16.msra.mxu0 0
    %379 = vmatprep.mubr.bf16.mxu0 0
    %380 = vmatmul.mubr.bf16.gmra.mrb[0].mxu0 %v275
    %v381 = vpop.f32.mrb[0].mxu0
    %v382 = vadd.f32 %v297, %v381
    %v383 = vpop.f32.mrb[0].mxu0
    %v384 = vpop.f32.mrb[0].mxu0
    %v385 = vadd.f32 %v297, %v384
    %v386 = vpop.f32.mrb[0].mxu0
    %387 = vdwg.mxu0
    %v388 = vlaneseq
    %v389 = vand.u32 %v388, 127
    %vm390 = vcmp.lt.s32.totalorder %v389, 16
    %v391 = vsel %vm390, %v382, -inf
    %v392 = vsel %vm390, %v385, -inf
    %393 = vmax.xlane.f32.xlu0 %v391
    %v394 = vpop.xlane.xlu0 %393
    %395 = vmax.xlane.f32.xlu0 %v392
    %v396 = vpop.xlane.xlu0 %395
    %v397 = vsub.f32 %v391, %v394
    %v398 = vsub.f32 %v392, %v396
    %v399 = vmul.f32 %v397, 1.442695
    %v400 = vpow.pop %v399
    %v401 = vmul.f32 %v398, 1.442695
    %v402 = vpow.pop %v401
    %403 = vadd.xlane.f32.xlu0 %v400
    %v404 = vpop.xlane.xlu0 %403
    %405 = vadd.xlane.f32.xlu0 %v402
    %v406 = vpop.xlane.xlu0 %405
    %v407 = vrcp.pop %v404
    %v408 = vmul.f32 %v400, %v407
    %v409 = vrcp.pop %v406
    %v410 = vmul.f32 %v402, %v409
    %411 = vst [vmem:[#allocation10] sm:$0xff] %v408
    %412 = vst [vmem:[#allocation10 + $0x8] sm:$0xff] %v410
    // Predicated region
    $region46: #{tpu_custom_call.1} parent=1 // pred_check
      _
    $region47: #{tpu_custom_call.1} parent=1 // pred_check_branch
      %414 = sbr.rel (0) target = $region49
    $region48: #{tpu_custom_call.1} parent=1 // pred_region
      %s416 = ssub.s32 256, 256
      %417 = vsyncadd [#allocation4], %s416
      %s418 = sshll.u32 [#allocation10], 4
      %s419 = int_to_ptr.vmem [resolvable:$true] %s418
      %424 = dma.vmem_to_hbm [thread:$0]  %s419, 256, %s7, [#allocation4], 128, 128, 8
    $region49: #{tpu_custom_call.1} parent=1 // pred_fallthru
      _
    // Predicated region
    $region50: #{tpu_custom_call.1} parent=1 // pred_check
      _
    $region51: #{tpu_custom_call.1} parent=1 // pred_check_branch
      %426 = sbr.rel (0) target = $region53
    $region52: #{tpu_custom_call.1} parent=1 // pred_region
      %427 = dma.done [#allocation4], 256
    $region53: #{tpu_custom_call.1} parent=1 // pred_fallthru
      _
    %428 = vsyncpa [#allocation3], 1
    %429 = vsyncpa [#allocation6], 1
    %430 = vsyncpa [#allocation9], 1
    %431 = vsyncpa [#allocation4], 1

</llo_original>
